<compile_context>
chip_gen: v7x
topology: tpu7x:2x2x1
jax: 0.10.0
libtpu: 0.0.40
codegen_flags: <defaults>
</compile_context>

<pallas_src>
import functools

import jax
import jax.numpy as jnp
from jax.experimental import pallas as pl
from jax.experimental.pallas import tpu as pltpu

_LANE = 128
_SUBLANE = 8


def _round_up(n, m):
    return ((n + m - 1) // m) * m


def _pick_block_b(B, cap=512):
    """Largest batch tile <= cap that divides B (multiple of 8 when tiled)."""
    if B <= cap:
        return B                      # single grid step, full batch resident
    for cand in range(min(cap, B), _SUBLANE - 1, -1):
        if cand % _SUBLANE == 0 and B % cand == 0:
            return cand
    return B                          # fallback: one big tile


# ----------------------------------------------------------------------------
# Kernels
# ----------------------------------------------------------------------------
def _fwd_eval_kernel(x_ref, w_ref, b_ref, o_ref):
    """One batch tile of ReLU(x @ W + b)."""
    y = jnp.dot(x_ref[...], w_ref[...], preferred_element_type=jnp.float32)
    y = jnp.maximum(y + b_ref[...], 0.0)          # bias broadcast + ReLU (VPU)
    o_ref[...] = y.astype(o_ref.dtype)


def _fwd_train_kernel(x_ref, w_ref, b_ref, m_ref, o_ref):
    """One batch tile of Dropout(ReLU(x @ W + b)).

    m_ref already holds the inverted-dropout multiplier {0, 1/(1-p)}, so the
    dropout is a single VPU multiply.
    """
    y = jnp.dot(x_ref[...], w_ref[...], preferred_element_type=jnp.float32)
    y = jnp.maximum(y + b_ref[...], 0.0)
    y = y * m_ref[...]
    o_ref[...] = y.astype(o_ref.dtype)


# ----------------------------------------------------------------------------
# Wrapper
# ----------------------------------------------------------------------------
def participant_forward(x, w, b, *, key=None, training=False, p=0.5,
                        block_b=None, compute_dtype=None):
    """x: [B, input_size], w: [input_size, hidden_size], b: [hidden_size]."""
    B, D_in = x.shape
    D_in2, H = w.shape
    assert D_in == D_in2, "weight / input feature mismatch"
    assert b.shape == (H,), "bias shape mismatch"
    out_dtype = x.dtype

    # ---- lane-dense hidden dim: pad to a multiple of 128 ------------------
    H_pad = max(_LANE, _round_up(H, _LANE))
    if H_pad != H:
        w = jnp.pad(w, ((0, 0), (0, H_pad - H)))
        b = jnp.pad(b, (0, H_pad - H))
    b2 = b.reshape(1, H_pad).astype(jnp.float32)

    # ---- optional low-precision compute dtype for the MXU operands --------
    if compute_dtype is not None:
        x_in = x.astype(compute_dtype)
        w_in = w.astype(compute_dtype)
    else:
        x_in = x
        w_in = w

    # ---- batch tiling ------------------------------------------------------
    if block_b is None:
        block_b = _pick_block_b(B)
    assert B % block_b == 0, "batch must divide evenly into batch tiles"
    grid = (B // block_b,)

    # ---- dropout mask (host-side RNG, inverted-dropout pre-scaled) --------
    use_dropout = bool(training) and p > 0.0
    if use_dropout:
        if key is None:
            key = jax.random.PRNGKey(0)
        if p >= 1.0:
            mask = jnp.zeros((B, H_pad), jnp.float32)
        else:
            keep = jax.random.bernoulli(key, 1.0 - p, (B, H_pad))
            mask = keep.astype(jnp.float32) * jnp.float32(1.0 / (1.0 - p))

    # ---- VMEM budget / cost estimate ---------------------------------------
    in_itemsize = jnp.dtype(x_in.dtype).itemsize
    out_itemsize = jnp.dtype(out_dtype).itemsize
    bytes_x_tile = block_b * D_in * in_itemsize
    bytes_out_tile = block_b * H_pad * out_itemsize
    bytes_mask_tile = block_b * H_pad * 4 if use_dropout else 0
    bytes_w = D_in * H_pad * in_itemsize
    bytes_b = H_pad * 4
    vmem_needed = (2 * (bytes_x_tile + bytes_out_tile + bytes_mask_tile)
                   + 2 * (bytes_w + bytes_b) + (4 << 20))          # headroom
    vmem_limit = int(min(max(vmem_needed, 16 << 20), 64 << 20))    # v7x cap
    # TODO(synk): if D_in*H_pad weight ever exceeds ~half the VMEM budget
    # (not the case for MNIST-scale layers), add a K grid axis + f32 acc
    # scratch with pl.when init/finalize instead of a fully resident weight.

    cost = pl.CostEstimate(
        flops=2 * B * D_in * H_pad,
        transcendentals=0,
        bytes_accessed=(B * D_in * in_itemsize + bytes_w + bytes_b
                        + B * H_pad * out_itemsize
                        + (B * H_pad * 4 if use_dropout else 0)),
    )

    x_spec = pl.BlockSpec((block_b, D_in), lambda i: (i, 0))
    w_spec = pl.BlockSpec((D_in, H_pad), lambda i: (0, 0))   # resident weight
    b_spec = pl.BlockSpec((1, H_pad), lambda i: (0, 0))
    o_spec = pl.BlockSpec((block_b, H_pad), lambda i: (i, 0))

    compiler_params = pltpu.CompilerParams(
        dimension_semantics=("parallel",),
        vmem_limit_bytes=vmem_limit,
    )

    if use_dropout:
        m_spec = pl.BlockSpec((block_b, H_pad), lambda i: (i, 0))
        out = pl.pallas_call(
            _fwd_train_kernel,
            out_shape=jax.ShapeDtypeStruct((B, H_pad), out_dtype),
            grid=grid,
            in_specs=[x_spec, w_spec, b_spec, m_spec],
            out_specs=o_spec,
            compiler_params=compiler_params,
            cost_estimate=cost,
        )(x_in, w_in, b2, mask)
    else:
        out = pl.pallas_call(
            _fwd_eval_kernel,
            out_shape=jax.ShapeDtypeStruct((B, H_pad), out_dtype),
            grid=grid,
            in_specs=[x_spec, w_spec, b_spec],
            out_specs=o_spec,
            compiler_params=compiler_params,
            cost_estimate=cost,
        )(x_in, w_in, b2)

    if H_pad != H:
        out = out[:, :H]
    return out


def init_params(key, input_size, hidden_size):
    """Mimic nn.Linear default init (uniform +-1/sqrt(fan_in))."""
    k_w, k_b = jax.random.split(key)
    bound = 1.0 / (input_size ** 0.5)
    # Stored as [input_size, hidden_size] (transposed vs. PyTorch).
    w = jax.random.uniform(k_w, (input_size, hidden_size), jnp.float32,
                           minval=-bound, maxval=bound)
    b = jax.random.uniform(k_b, (hidden_size,), jnp.float32,
                           minval=-bound, maxval=bound)
    return w, b


if __name__ == "__main__":
    # Small shapes consistent with forward(): x [batch, input_size],
    # Linear(input_size -> hidden_size). output_size / num_participants only
    # affect `predict` (the output_layer), which is not part of forward().
    # TODO(synk): `predict` (output_layer over concatenated hidden outputs) is
    # a second plain Linear; not part of forward() so not implemented here.
    batch, input_size, hidden_size = 8, 32, 64

    key = jax.random.PRNGKey(0)
    k_x, k_p = jax.random.split(key)
    x = jax.random.normal(k_x, (batch, input_size), dtype=jnp.float32)
    w, b = init_params(k_p, input_size, hidden_size)

    # Pure-JAX reference.
    ref = jnp.maximum(x @ w + b[None, :], 0.0)

    # 1) Eval-mode forward (dropout is identity), f32 compute.
    out = jax.block_until_ready(participant_forward(x, w, b, training=False))
    assert out.shape == (batch, hidden_size)
    assert jnp.allclose(out, ref, atol=1e-5, rtol=1e-5), "eval mismatch vs reference"

    # 2) Train-mode forward: entries are either 0 (dropped) or 2x the eval
    #    activation (inverted dropout with p=0.5).
    out_train = jax.block_until_ready(
        participant_forward(x, w, b, key=jax.random.PRNGKey(123),
                            training=True, p=0.5)
    )
    assert out_train.shape == (batch, hidden_size)
    ok = (jnp.abs(out_train) < 1e-6) | (jnp.abs(out_train - 2.0 * ref) < 1e-4)
    assert bool(jnp.all(ok)), "train-mode dropout mismatch vs reference"

    # 3) Optional bf16 compute path (looser tolerance).
    out_bf16 = jax.block_until_ready(
        participant_forward(x, w, b, training=False, compute_dtype=jnp.bfloat16)
    )
    assert jnp.allclose(out_bf16, ref, atol=5e-2, rtol=5e-2), "bf16 mismatch"

    print("KERNEL_OK")
</pallas_src>

<mosaic_0001>
module attributes {stable_mosaic.version = 11 : i64} {
  func.func @_fwd_eval_kernel(%arg0: i32, %arg1: memref<8x32xf32, #tpu.memory_space<vmem>>, %arg2: memref<32x128xf32, #tpu.memory_space<vmem>>, %arg3: memref<1x128xf32, #tpu.memory_space<vmem>>, %arg4: memref<8x128xf32, #tpu.memory_space<vmem>>) attributes {dimension_semantics = [#tpu.dimension_semantics<parallel>], iteration_bounds = array<i64: 1>, scalar_prefetch = 0 : i64, scratch_operands = 0 : i64, tpu.core_type = #tpu.core_type<tc>, window_params = [{transform_indices = @transform_0, window_bounds = array<i64: 8, 32>}, {pipeline_mode = #tpu.pipeline_mode<synchronous>, transform_indices = @transform_1, window_bounds = array<i64: 32, 128>}, {pipeline_mode = #tpu.pipeline_mode<synchronous>, transform_indices = @transform_2, window_bounds = array<i64: 1, 128>}, {transform_indices = @transform_3, window_bounds = array<i64: 8, 128>}]} {
    %c0 = arith.constant 0 : index
    %c0_0 = arith.constant 0 : index
    %0 = vector.load %arg1[%c0, %c0_0] : memref<8x32xf32, #tpu.memory_space<vmem>>, vector<8x32xf32>
    %c0_1 = arith.constant 0 : index
    %c0_2 = arith.constant 0 : index
    %1 = vector.load %arg2[%c0_1, %c0_2] : memref<32x128xf32, #tpu.memory_space<vmem>>, vector<32x128xf32>
    %cst = arith.constant dense<0.000000e+00> : vector<8x128xf32>
    %2 = tpu.matmul %0, %1, %cst {dimension_numbers = #tpu.dot_dimension_numbers<[1], [0], [0], [1], [0, 0, 1, 1], [], []>} : vector<8x32xf32>, vector<32x128xf32>, vector<8x128xf32> -> vector<8x128xf32>
    %c0_3 = arith.constant 0 : index
    %c0_4 = arith.constant 0 : index
    %3 = vector.load %arg3[%c0_3, %c0_4] : memref<1x128xf32, #tpu.memory_space<vmem>>, vector<1x128xf32>
    %4 = vector.broadcast %3 : vector<1x128xf32> to vector<8x128xf32>
    %5 = arith.addf %2, %4 : vector<8x128xf32>
    %cst_5 = arith.constant 0.000000e+00 : f32
    %6 = vector.broadcast %cst_5 : f32 to vector<8x128xf32>
    %7 = arith.maximumf %5, %6 : vector<8x128xf32>
    %c0_6 = arith.constant 0 : index
    %c0_7 = arith.constant 0 : index
    %8 = vector.load %arg4[%c0_6, %c0_7] : memref<8x128xf32, #tpu.memory_space<vmem>>, vector<8x128xf32>
    tpu.vector_store %arg4[%c0_6, %c0_7], %7 {strides = array<i32>} : memref<8x128xf32, #tpu.memory_space<vmem>>, vector<8x128xf32>,
    return
  }
  func.func @transform_0(%arg0: i32) -> (i32, i32) {
    %c0_i32 = arith.constant 0 : i32
    %c0_i32_0 = arith.constant 0 : i32
    return %arg0, %c0_i32 : i32, i32
  }
  func.func @transform_1(%arg0: i32) -> (i32, i32) {
    %c0_i32 = arith.constant 0 : i32
    %c0_i32_0 = arith.constant 0 : i32
    %c0_i32_1 = arith.constant 0 : i32
    return %c0_i32, %c0_i32_0 : i32, i32
  }
  func.func @transform_2(%arg0: i32) -> (i32, i32) {
    %c0_i32 = arith.constant 0 : i32
    %c0_i32_0 = arith.constant 0 : i32
    %c0_i32_1 = arith.constant 0 : i32
    return %c0_i32, %c0_i32_0 : i32, i32
  }
  func.func @transform_3(%arg0: i32) -> (i32, i32) {
    %c0_i32 = arith.constant 0 : i32
    %c0_i32_0 = arith.constant 0 : i32
    return %arg0, %c0_i32 : i32, i32
  }
}

</mosaic_0001>

<llo_original>
// kernel: tpu_custom_call.1
$region0: #{tpu_custom_call.1}
  #allocation0 [shape = 'u32[]', space=smem, size = 0x4, offset = 0x4, fixed_abs, tag = 'smem constant byte address 0x4 - core index']
  #allocation1 [shape = 'u32[144,128]{1,0:T(1,128)}', space=vmem, size = 0x12000, scoped, tag = 'internal scratch']
  %s0 = inlined_call_operand.hbm [shape: f32[8,32], index: 0, kind: input, shape index: {}]
  %s1 = inlined_call_operand.hbm [shape: f32[32,128], index: 1, kind: input, shape index: {}]
  %s2 = inlined_call_operand.vmem [shape: f32[1,128], index: 2, kind: input, shape index: {}]
  %s3 = inlined_call_operand.hbm [shape: f32[8,128], index: 3, kind: output, shape index: {}]
  %s4 = sld [smem:[#allocation0]]
  $region30: #{tpu_custom_call.1} parent=0
    _
  %s6 = ssub.s32 1, %s4
  %s7 = scalar_select 0, %s6, %s4
  $region1: #{tpu_custom_call.1} parent=0
    #allocation2 [shape = 'u8[4096]{0}', space=vmem, size = 0x1000, scoped, tag = 'input window, operand 0, single buffered']
    #allocation3 [shape = 's32[1]{0}', space=sflag, size = 0x4, scoped, tag = 'scoped memory for tpu_custom_call.1']
    #allocation4 [shape = 's32[1]{0}', space=sflag, size = 0x4, scoped, tag = 'scoped memory for tpu_custom_call.1']
    #allocation5 [shape = 'u8[16384]{0}', space=vmem, size = 0x4000, scoped, tag = 'input window, operand 1, single buffered']
    #allocation6 [shape = 's32[1]{0}', space=sflag, size = 0x4, scoped, tag = 'scoped memory for tpu_custom_call.1']
    #allocation7 [shape = 'u8[4096]{0}', space=vmem, size = 0x1000, scoped, tag = 'output window, operand 0, single buffered']
    %8 = vsyncpa [#allocation3], 0
    %9 = vsyncpa [#allocation6], 0
    %10 = vsyncpa [#allocation4], 0
    // Predicated region
    $region2: #{tpu_custom_call.1} parent=1 // pred_check
      _
    $region3: #{tpu_custom_call.1} parent=1 // pred_check_branch
      %12 = sbr.rel (0) target = $region5
    $region4: #{tpu_custom_call.1} parent=1 // pred_region
      %s14 = ssub.s32 128, 128
      %15 = vsyncadd [#allocation3], %s14
      %s17 = sshll.u32 [#allocation2], 4
      %s18 = int_to_ptr.vmem [resolvable:$true] %s17
      %20 = dma.hbm_to_vmem [thread:$0]  %s0, 128, %s18, [#allocation3]
    $region5: #{tpu_custom_call.1} parent=1 // pred_fallthru
      _
    // Predicated region
    $region6: #{tpu_custom_call.1} parent=1 // pred_check
      _
    $region7: #{tpu_custom_call.1} parent=1 // pred_check_branch
      %22 = sbr.rel (0) target = $region9
    $region8: #{tpu_custom_call.1} parent=1 // pred_region
      %s24 = ssub.s32 512, 512
      %25 = vsyncadd [#allocation6], %s24
      %s26 = sshll.u32 [#allocation5], 4
      %s27 = int_to_ptr.vmem [resolvable:$true] %s26
      %32 = dma.hbm_to_vmem [thread:$0]  %s1, 512, %s27, [#allocation6], 128, 128, 8
    $region9: #{tpu_custom_call.1} parent=1 // pred_fallthru
      _
    // Predicated region
    $region10: #{tpu_custom_call.1} parent=1 // pred_check
      _
    $region11: #{tpu_custom_call.1} parent=1 // pred_check_branch
      %34 = sbr.rel (0) target = $region13
    $region12: #{tpu_custom_call.1} parent=1 // pred_region
      _
    $region13: #{tpu_custom_call.1} parent=1 // pred_fallthru
      _
    // Predicated region
    $region14: #{tpu_custom_call.1} parent=1 // pred_check
      _
    $region15: #{tpu_custom_call.1} parent=1 // pred_check_branch
      %36 = sbr.rel (0) target = $region17
    $region16: #{tpu_custom_call.1} parent=1 // pred_region
      %37 = dma.done [#allocation3], 128
    $region17: #{tpu_custom_call.1} parent=1 // pred_fallthru
      _
    // Predicated region
    $region18: #{tpu_custom_call.1} parent=1 // pred_check
      _
    $region19: #{tpu_custom_call.1} parent=1 // pred_check_branch
      %39 = sbr.rel (0) target = $region21
    $region20: #{tpu_custom_call.1} parent=1 // pred_region
      %40 = dma.done [#allocation6], 512
    $region21: #{tpu_custom_call.1} parent=1 // pred_fallthru
      _
    %v41 = vld [vmem:[#allocation2] sm:$0xff]
    %v42 = vld [vmem:[#allocation5] sm:$0xff]
    %v43 = vld [vmem:[#allocation5 + $0x8] sm:$0xff]
    %v44 = vld [vmem:[#allocation5 + $0x10] sm:$0xff]
    %v45 = vld [vmem:[#allocation5 + $0x18] sm:$0xff]
    %v46 = vld [vmem:[%s2] sm:$0x1]
    %v48 = vlaneseq
    %v49 = vshrl.u32 %v48, 7
    %v50 = vsub.s32 0, %v49
    %v51 = vrot.slane %v46, %v50
    %vm53 = vcmask 261120
    %v55 = vsel %vm53, %v41, 0
    %57 = vmatprep.subr.mxu0 0.0
    %58 = vmatpush1.msra.mxu0 %v42
    %59 = vmatprep.subr.mxu0 0.0
    %60 = vmatpush1.msra.mxu0 %v43
    %61 = vmatprep.subr.mxu0 0.0
    %62 = vmatpush1.msra.mxu0 %v44
    %63 = vmatprep.subr.mxu0 0.0
    %64 = vmatpush1.msra.mxu0 %v45
    %65 = vmatprep.subr.mxu0 0.0
    %66 = vmatpush1.msra.mxu0 0.0
    %67 = vmatprep.subr.mxu0 0.0
    %68 = vmatpush1.msra.mxu0 0.0
    %69 = vmatprep.subr.mxu0 0.0
    %70 = vmatpush1.msra.mxu0 0.0
    %71 = vmatprep.subr.mxu0 0.0
    %72 = vmatpush1.msra.mxu0 0.0
    %73 = vmatprep.subr.mxu0 0.0
    %74 = vmatpush1.msra.mxu0 0.0
    %75 = vmatprep.subr.mxu0 0.0
    %76 = vmatpush1.msra.mxu0 0.0
    %77 = vmatprep.subr.mxu0 0.0
    %78 = vmatpush1.msra.mxu0 0.0
    %79 = vmatprep.subr.mxu0 0.0
    %80 = vmatpush1.msra.mxu0 0.0
    %81 = vmatprep.subr.mxu0 0.0
    %82 = vmatpush1.msra.mxu0 0.0
    %83 = vmatprep.subr.mxu0 0.0
    %84 = vmatpush1.msra.mxu0 0.0
    %85 = vmatprep.subr.mxu0 0.0
    %86 = vmatpush1.msra.mxu0 0.0
    %87 = vmatprep.subr.mxu0 0.0
    %88 = vmatpush1.msra.mxu0 0.0
    %89 = vmatprep.subr.mxu0 0.0
    %90 = vmatpush1.msra.mxu0 0.0
    %91 = vmatprep.subr.mxu0 0.0
    %92 = vmatpush1.msra.mxu0 0.0
    %93 = vmatprep.subr.mxu0 0.0
    %94 = vmatpush1.msra.mxu0 0.0
    %95 = vmatprep.subr.mxu0 0.0
    %96 = vmatpush1.msra.mxu0 0.0
    %97 = vmatprep.subr.mxu0 0.0
    %98 = vmatpush1.msra.mxu0 0.0
    %99 = vmatprep.subr.mxu0 0.0
    %100 = vmatpush1.msra.mxu0 0.0
    %101 = vmatprep.subr.mxu0 0.0
    %102 = vmatpush1.msra.mxu0 0.0
    %103 = vmatprep.subr.mxu0 0.0
    %104 = vmatpush1.msra.mxu0 0.0
    %105 = vmatprep.subr.mxu0 0.0
    %106 = vmatpush1.msra.mxu0 0.0
    %107 = vmatprep.subr.mxu0 0.0
    %108 = vmatpush1.msra.mxu0 0.0
    %109 = vmatprep.subr.mxu0 0.0
    %110 = vmatpush1.msra.mxu0 0.0
    %111 = vmatprep.subr.mxu0 0.0
    %112 = vmatpush1.msra.mxu0 0.0
    %113 = vmatprep.subr.mxu0 0.0
    %114 = vmatpush1.msra.mxu0 0.0
    %115 = vmatprep.subr.mxu0 0.0
    %116 = vmatpush1.msra.mxu0 0.0
    %117 = vmatprep.subr.mxu0 0.0
    %118 = vmatpush1.msra.mxu0 0.0
    %119 = vmatprep.subr.mxu0 0.0
    %120 = vmatpush1.msra.mxu0 0.0
    %121 = vmatprep.mubr.f32.mxu0 0.0
    %122 = vmatmul.mubr.f32.gmra.mrb[0].mxu0 %v55
    %v123 = vpop.f32.mrb[0].mxu0
    %v124 = vadd.f32 %v51, %v123
    %v125 = vpop.f32.mrb[0].mxu0
    %126 = vdwg.mxu0
    %v127 = vmax.f32 %v124, 0.0
    %128 = vst [vmem:[#allocation7] sm:$0xff] %v127
    // Predicated region
    $region22: #{tpu_custom_call.1} parent=1 // pred_check
      _
    $region23: #{tpu_custom_call.1} parent=1 // pred_check_branch
      %130 = sbr.rel (0) target = $region25
    $region24: #{tpu_custom_call.1} parent=1 // pred_region
      %s132 = ssub.s32 128, 128
      %133 = vsyncadd [#allocation4], %s132
      %s135 = sshll.u32 [#allocation7], 4
      %s136 = int_to_ptr.vmem [resolvable:$true] %s135
      %138 = dma.vmem_to_hbm [thread:$0]  %s136, 128, %s3, [#allocation4]
    $region25: #{tpu_custom_call.1} parent=1 // pred_fallthru
      _
    // Predicated region
    $region26: #{tpu_custom_call.1} parent=1 // pred_check
      _
    $region27: #{tpu_custom_call.1} parent=1 // pred_check_branch
      %140 = sbr.rel (0) target = $region29
    $region28: #{tpu_custom_call.1} parent=1 // pred_region
      %141 = dma.done [#allocation4], 128
    $region29: #{tpu_custom_call.1} parent=1 // pred_fallthru
      _
    %142 = vsyncpa [#allocation3], 1
    %143 = vsyncpa [#allocation6], 1
    %144 = vsyncpa [#allocation4], 1

</llo_original>
